<compile_context>
chip_gen: v5e
topology: v5e:2x2
jax: 0.10.0
libtpu: 0.0.40
codegen_flags: <defaults>
</compile_context>

<pallas_src>
import functools

import jax
import jax.numpy as jnp
from jax.experimental import pallas as pl
from jax.experimental.pallas import tpu as pltpu


def temporal_conv_kernel(x_ref, w_ref, cb_ref, g_ref, beta_ref, o_ref, *, seq_len):
    # x_ref:    (R, D)  rows = bB whole batch elements of T timesteps each (R = bB*T)
    # w_ref:    (3, D)  depthwise conv taps (tap index, channel)
    # cb_ref:   (1, D)  conv bias
    # g_ref:    (1, D)  layernorm gamma
    # beta_ref: (1, D)  layernorm beta
    x = x_ref[...]                              # (R, D)
    R = x.shape[0]

    w0 = w_ref[0:1, :]                          # (1, D) tap for x[s-1]
    w1 = w_ref[1:2, :]                          # (1, D) tap for x[s]
    w2 = w_ref[2:3, :]                          # (1, D) tap for x[s+1]

    # Time-shifted copies of x with zero padding at every sequence edge.
    # roll is circular (XLU); mask rows whose in-sequence position is 0 / T-1 so
    # neither block wrap-around nor adjacent batch elements leak across edges.
    row = jax.lax.broadcasted_iota(jnp.int32, x.shape, 0)
    tpos = row % seq_len
    x_m1 = jnp.where(tpos == 0, 0.0, pltpu.roll(x, shift=1, axis=0))            # x[s-1]
    x_p1 = jnp.where(tpos == seq_len - 1, 0.0, pltpu.roll(x, shift=R - 1, axis=0))  # x[s+1]

    # Depthwise conv along T (cross-correlation, padding=1) + bias
    t = x_m1 * w0 + x * w1 + x_p1 * w2 + cb_ref[...]

    # LayerNorm over channel dim D (eps = 1e-5, PyTorch default); reuse (t - mean).
    mean = jnp.mean(t, axis=-1, keepdims=True)
    tc = t - mean
    var = jnp.mean(tc * tc, axis=-1, keepdims=True)
    tn = tc * jax.lax.rsqrt(var + 1e-5)
    tn = tn * g_ref[...] + beta_ref[...]

    # Exact (erf-based) GELU, matching nn.GELU() default — lands on the EUP slot.
    inv_sqrt2 = jnp.float32(0.7071067811865476)
    ge = 0.5 * tn * (1.0 + jax.lax.erf(tn * inv_sqrt2))

    # Residual add
    o_ref[...] = x + ge


def _pick_batch_block(B, T, D, itemsize, target_bytes=2 << 20):
    """Largest divisor-of-B batch block whose (bB*T, D) tile is ~target_bytes,
    keeps >=2 grid steps when B allows it (v7x megacore), and keeps the row
    count sublane-aligned (multiple of 8) unless the block is the full array."""
    bytes_per_elem = T * D * itemsize
    cap = max(1, target_bytes // bytes_per_elem)
    cap = min(cap, B)
    if B >= 2:
        cap = min(cap, (B + 1) // 2)   # leave at least 2 grid steps
    for bb in range(cap, 0, -1):
        if B % bb == 0 and ((bb * T) % 8 == 0 or bb == B):
            return bb
    return B  # full array in one block is always a legal block shape


def temporal_conv(x, conv_w, conv_b, gamma, beta, *, target_tile_bytes=2 << 20):
    """x: (B, T, D) float32.  conv_w: (3, D).  conv_b/gamma/beta: (1, D)."""
    B, T, D = x.shape
    bb = _pick_batch_block(B, T, D, x.dtype.itemsize, target_tile_bytes)
    R = bb * T                     # rows per block
    nb = B // bb                   # grid steps

    x2 = x.reshape(B * T, D)       # lane-dense (rows, channels) slab

    kernel = functools.partial(temporal_conv_kernel, seq_len=T)
    out = pl.pallas_call(
        kernel,
        out_shape=jax.ShapeDtypeStruct((B * T, D), x.dtype),
        grid_spec=pltpu.PrefetchScalarGridSpec(
            num_scalar_prefetch=0,
            grid=(nb,),
            in_specs=[
                pl.BlockSpec((R, D), lambda i: (i, 0)),
                pl.BlockSpec((3, D), lambda i: (0, 0)),   # constant index_map -> resident
                pl.BlockSpec((1, D), lambda i: (0, 0)),
                pl.BlockSpec((1, D), lambda i: (0, 0)),
                pl.BlockSpec((1, D), lambda i: (0, 0)),
            ],
            out_specs=pl.BlockSpec((R, D), lambda i: (i, 0)),
        ),
        compiler_params=pltpu.CompilerParams(
            dimension_semantics=("parallel",)),
    )(x2, conv_w, conv_b, gamma, beta)
    return out.reshape(B, T, D)


def temporal_conv_ref(x, conv_w, conv_b, gamma, beta):
    """Pure-JAX reference with identical semantics."""
    B, T, D = x.shape
    xp = jnp.pad(x, ((0, 0), (1, 1), (0, 0)))
    t = (xp[:, :-2, :] * conv_w[0] + xp[:, 1:-1, :] * conv_w[1]
         + xp[:, 2:, :] * conv_w[2] + conv_b)
    mean = jnp.mean(t, axis=-1, keepdims=True)
    var = jnp.mean((t - mean) ** 2, axis=-1, keepdims=True)
    tn = (t - mean) / jnp.sqrt(var + 1e-5) * gamma + beta
    ge = 0.5 * tn * (1.0 + jax.lax.erf(tn / jnp.sqrt(2.0)))
    return x + ge


if __name__ == "__main__":
    B, T, D = 2, 16, 128  # batch, seq, hidden (dim)

    key = jax.random.PRNGKey(0)
    k_x, k_w, k_b, k_g, k_be = jax.random.split(key, 5)

    x = jax.random.normal(k_x, (B, T, D), dtype=jnp.float32)
    # Conv1d(dim, dim, 3, groups=dim) weight is (D, 1, 3) in torch; stored here as (3, D).
    conv_w = jax.random.normal(k_w, (3, D), dtype=jnp.float32) * 0.3
    conv_b = jax.random.normal(k_b, (1, D), dtype=jnp.float32) * 0.1
    gamma = 1.0 + 0.1 * jax.random.normal(k_g, (1, D), dtype=jnp.float32)
    beta = 0.1 * jax.random.normal(k_be, (1, D), dtype=jnp.float32)

    out = temporal_conv(x, conv_w, conv_b, gamma, beta)
    out = jax.block_until_ready(out)

    ref = temporal_conv_ref(x, conv_w, conv_b, gamma.reshape(D), beta.reshape(D))
    assert out.shape == (B, T, D)
    assert jnp.allclose(out, ref, atol=1e-5, rtol=1e-5), "mismatch vs reference"

    print("KERNEL_OK")
</pallas_src>

<mosaic_0001>
module attributes {stable_mosaic.version = 11 : i64} {
  func.func @temporal_conv_kernel(%arg0: i32, %arg1: memref<16x128xf32, #tpu.memory_space<vmem>>, %arg2: memref<3x128xf32, #tpu.memory_space<vmem>>, %arg3: memref<1x128xf32, #tpu.memory_space<vmem>>, %arg4: memref<1x128xf32, #tpu.memory_space<vmem>>, %arg5: memref<1x128xf32, #tpu.memory_space<vmem>>, %arg6: memref<16x128xf32, #tpu.memory_space<vmem>>) attributes {dimension_semantics = [#tpu.dimension_semantics<parallel>], iteration_bounds = array<i64: 2>, scalar_prefetch = 0 : i64, scratch_operands = 0 : i64, tpu.core_type = #tpu.core_type<tc>, window_params = [{transform_indices = @transform_0, window_bounds = array<i64: 16, 128>}, {pipeline_mode = #tpu.pipeline_mode<synchronous>, transform_indices = @transform_1, window_bounds = array<i64: 3, 128>}, {pipeline_mode = #tpu.pipeline_mode<synchronous>, transform_indices = @transform_2, window_bounds = array<i64: 1, 128>}, {pipeline_mode = #tpu.pipeline_mode<synchronous>, transform_indices = @transform_3, window_bounds = array<i64: 1, 128>}, {pipeline_mode = #tpu.pipeline_mode<synchronous>, transform_indices = @transform_4, window_bounds = array<i64: 1, 128>}, {transform_indices = @transform_5, window_bounds = array<i64: 16, 128>}]} {
    %c0 = arith.constant 0 : index
    %c0_0 = arith.constant 0 : index
    %0 = vector.load %arg1[%c0, %c0_0] : memref<16x128xf32, #tpu.memory_space<vmem>>, vector<16x128xf32>
    %c0_1 = arith.constant 0 : index
    %c0_2 = arith.constant 0 : index
    %1 = vector.load %arg2[%c0_1, %c0_2] : memref<3x128xf32, #tpu.memory_space<vmem>>, vector<1x128xf32>
    %c1 = arith.constant 1 : index
    %c0_3 = arith.constant 0 : index
    %2 = vector.load %arg2[%c1, %c0_3] : memref<3x128xf32, #tpu.memory_space<vmem>>, vector<1x128xf32>
    %c2 = arith.constant 2 : index
    %c0_4 = arith.constant 0 : index
    %3 = vector.load %arg2[%c2, %c0_4] : memref<3x128xf32, #tpu.memory_space<vmem>>, vector<1x128xf32>
    %4 = tpu.iota {dimensions = array<i32: 0>} : vector<16x128xi32>
    %c16_i32 = arith.constant 16 : i32
    %c0_i32 = arith.constant 0 : i32
    %5 = arith.cmpi eq, %c16_i32, %c0_i32 : i32
    %c1_i32 = arith.constant 1 : i32
    %6 = arith.select %5, %c1_i32, %c16_i32 : i32
    %7 = vector.broadcast %6 : i32 to vector<16x128xi32>
    %8 = arith.remsi %4, %7 : vector<16x128xi32>
    %c0_i32_5 = arith.constant 0 : i32
    %9 = vector.broadcast %c0_i32_5 : i32 to vector<16x128xi32>
    %10 = arith.cmpi ne, %8, %9 : vector<16x128xi32>
    %c0_i32_6 = arith.constant 0 : i32
    %11 = vector.broadcast %c0_i32_6 : i32 to vector<16x128xi32>
    %12 = arith.cmpi slt, %8, %11 : vector<16x128xi32>
    %c0_i32_7 = arith.constant 0 : i32
    %13 = arith.cmpi slt, %6, %c0_i32_7 : i32
    %14 = vector.broadcast %13 : i1 to vector<16x128xi1>
    %15 = vector.broadcast %14 : vector<16x128xi1> to vector<16x128xi1>
    %16 = arith.xori %12, %15 : vector<16x128xi1>
    %17 = arith.andi %16, %10 : vector<16x128xi1>
    %18 = vector.broadcast %6 : i32 to vector<16x128xi32>
    %19 = arith.addi %8, %18 : vector<16x128xi32>
    %20 = arith.select %17, %19, %8 : vector<16x128xi1>, vector<16x128xi32>
    %c0_i32_8 = arith.constant 0 : i32
    %21 = vector.broadcast %c0_i32_8 : i32 to vector<16x128xi32>
    %22 = arith.cmpi eq, %20, %21 : vector<16x128xi32>
    %c1_i32_9 = arith.constant 1 : i32
    %23 = tpu.dynamic_rotate %0 by %c1_i32_9 dim 0 : vector<16x128xf32>, i32 -> vector<16x128xf32>
    %cst = arith.constant 0.000000e+00 : f32
    %24 = vector.broadcast %cst : f32 to vector<16x128xf32>
    %25 = arith.select %22, %24, %23 : vector<16x128xi1>, vector<16x128xf32>
    %c15_i32 = arith.constant 15 : i32
    %26 = vector.broadcast %c15_i32 : i32 to vector<16x128xi32>
    %27 = arith.cmpi eq, %20, %26 : vector<16x128xi32>
    %c15_i32_10 = arith.constant 15 : i32
    %28 = tpu.dynamic_rotate %0 by %c15_i32_10 dim 0 : vector<16x128xf32>, i32 -> vector<16x128xf32>
    %cst_11 = arith.constant 0.000000e+00 : f32
    %29 = vector.broadcast %cst_11 : f32 to vector<16x128xf32>
    %30 = arith.select %27, %29, %28 : vector<16x128xi1>, vector<16x128xf32>
    %31 = vector.broadcast %1 : vector<1x128xf32> to vector<16x128xf32>
    %32 = arith.mulf %25, %31 : vector<16x128xf32>
    %33 = vector.broadcast %2 : vector<1x128xf32> to vector<16x128xf32>
    %34 = arith.mulf %0, %33 : vector<16x128xf32>
    %35 = arith.addf %32, %34 : vector<16x128xf32>
    %36 = vector.broadcast %3 : vector<1x128xf32> to vector<16x128xf32>
    %37 = arith.mulf %30, %36 : vector<16x128xf32>
    %38 = arith.addf %35, %37 : vector<16x128xf32>
    %c0_12 = arith.constant 0 : index
    %c0_13 = arith.constant 0 : index
    %39 = vector.load %arg3[%c0_12, %c0_13] : memref<1x128xf32, #tpu.memory_space<vmem>>, vector<1x128xf32>
    %40 = vector.broadcast %39 : vector<1x128xf32> to vector<16x128xf32>
    %41 = arith.addf %38, %40 : vector<16x128xf32>
    %cst_14 = arith.constant dense<0.000000e+00> : vector<16xf32>
    %42 = vector.multi_reduction <add>, %41, %cst_14 [1] : vector<16x128xf32> to vector<16xf32>
    %43 = vector.shape_cast %42 : vector<16xf32> to vector<16x1xf32>
    %cst_15 = arith.constant 1.280000e+02 : f32
    %44 = vector.broadcast %cst_15 : f32 to vector<16x1xf32>
    %45 = arith.divf %43, %44 : vector<16x1xf32>
    %46 = vector.broadcast %45 : vector<16x1xf32> to vector<16x128xf32>
    %47 = arith.subf %41, %46 : vector<16x128xf32>
    %48 = arith.mulf %47, %47 : vector<16x128xf32>
    %cst_16 = arith.constant dense<0.000000e+00> : vector<16xf32>
    %49 = vector.multi_reduction <add>, %48, %cst_16 [1] : vector<16x128xf32> to vector<16xf32>
    %50 = vector.shape_cast %49 : vector<16xf32> to vector<16x1xf32>
    %cst_17 = arith.constant 1.280000e+02 : f32
    %51 = vector.broadcast %cst_17 : f32 to vector<16x1xf32>
    %52 = arith.divf %50, %51 : vector<16x1xf32>
    %cst_18 = arith.constant 9.99999974E-6 : f32
    %53 = vector.broadcast %cst_18 : f32 to vector<16x1xf32>
    %54 = arith.addf %52, %53 : vector<16x1xf32>
    %55 = math.rsqrt %54 : vector<16x1xf32>
    %56 = vector.broadcast %55 : vector<16x1xf32> to vector<16x128xf32>
    %57 = arith.mulf %47, %56 : vector<16x128xf32>
    %c0_19 = arith.constant 0 : index
    %c0_20 = arith.constant 0 : index
    %58 = vector.load %arg4[%c0_19, %c0_20] : memref<1x128xf32, #tpu.memory_space<vmem>>, vector<1x128xf32>
    %59 = vector.broadcast %58 : vector<1x128xf32> to vector<16x128xf32>
    %60 = arith.mulf %57, %59 : vector<16x128xf32>
    %c0_21 = arith.constant 0 : index
    %c0_22 = arith.constant 0 : index
    %61 = vector.load %arg5[%c0_21, %c0_22] : memref<1x128xf32, #tpu.memory_space<vmem>>, vector<1x128xf32>
    %62 = vector.broadcast %61 : vector<1x128xf32> to vector<16x128xf32>
    %63 = arith.addf %60, %62 : vector<16x128xf32>
    %cst_23 = arith.constant 5.000000e-01 : f32
    %64 = vector.broadcast %cst_23 : f32 to vector<16x128xf32>
    %65 = arith.mulf %64, %63 : vector<16x128xf32>
    %cst_24 = arith.constant 0.707106769 : f32
    %66 = vector.broadcast %cst_24 : f32 to vector<16x128xf32>
    %67 = arith.mulf %63, %66 : vector<16x128xf32>
    %68 = math.erf %67 : vector<16x128xf32>
    %cst_25 = arith.constant 1.000000e+00 : f32
    %69 = vector.broadcast %cst_25 : f32 to vector<16x128xf32>
    %70 = arith.addf %69, %68 : vector<16x128xf32>
    %71 = arith.mulf %65, %70 : vector<16x128xf32>
    %72 = arith.addf %0, %71 : vector<16x128xf32>
    %c0_26 = arith.constant 0 : index
    %c0_27 = arith.constant 0 : index
    %73 = vector.load %arg6[%c0_26, %c0_27] : memref<16x128xf32, #tpu.memory_space<vmem>>, vector<16x128xf32>
    tpu.vector_store %arg6[%c0_26, %c0_27], %72 {strides = array<i32>} : memref<16x128xf32, #tpu.memory_space<vmem>>, vector<16x128xf32>,
    return
  }
  func.func @transform_0(%arg0: i32) -> (i32, i32) {
    %c0_i32 = arith.constant 0 : i32
    %c0_i32_0 = arith.constant 0 : i32
    return %arg0, %c0_i32 : i32, i32
  }
  func.func @transform_1(%arg0: i32) -> (i32, i32) {
    %c0_i32 = arith.constant 0 : i32
    %c0_i32_0 = arith.constant 0 : i32
    %c0_i32_1 = arith.constant 0 : i32
    return %c0_i32, %c0_i32_0 : i32, i32
  }
  func.func @transform_2(%arg0: i32) -> (i32, i32) {
    %c0_i32 = arith.constant 0 : i32
    %c0_i32_0 = arith.constant 0 : i32
    %c0_i32_1 = arith.constant 0 : i32
    return %c0_i32, %c0_i32_0 : i32, i32
  }
  func.func @transform_3(%arg0: i32) -> (i32, i32) {
    %c0_i32 = arith.constant 0 : i32
    %c0_i32_0 = arith.constant 0 : i32
    %c0_i32_1 = arith.constant 0 : i32
    return %c0_i32, %c0_i32_0 : i32, i32
  }
  func.func @transform_4(%arg0: i32) -> (i32, i32) {
    %c0_i32 = arith.constant 0 : i32
    %c0_i32_0 = arith.constant 0 : i32
    %c0_i32_1 = arith.constant 0 : i32
    return %c0_i32, %c0_i32_0 : i32, i32
  }
  func.func @transform_5(%arg0: i32) -> (i32, i32) {
    %c0_i32 = arith.constant 0 : i32
    %c0_i32_0 = arith.constant 0 : i32
    return %arg0, %c0_i32 : i32, i32
  }
}

</mosaic_0001>

<llo_original>
// kernel: tpu_custom_call.1
$region0: #{tpu_custom_call.1}
  #allocation0 [shape = 'u32[]', space=smem, size = 0x4, offset = 0x4, fixed_abs, tag = 'smem constant byte address 0x4 - core index']
  #allocation1 [shape = 'u32[72,128]{1,0:T(1,128)}', space=vmem, size = 0x9000, scoped, tag = 'internal scratch']
  %s0 = inlined_call_operand.hbm [shape: f32[32,128], index: 0, kind: input, shape index: {}]
  %s1 = inlined_call_operand.hbm [shape: f32[3,128], index: 1, kind: input, shape index: {}]
  %s2 = inlined_call_operand.vmem [shape: f32[1,128], index: 2, kind: input, shape index: {}]
  %s3 = inlined_call_operand.vmem [shape: f32[1,128], index: 3, kind: input, shape index: {}]
  %s4 = inlined_call_operand.vmem [shape: f32[1,128], index: 4, kind: input, shape index: {}]
  %s5 = inlined_call_operand.hbm [shape: f32[32,128], index: 5, kind: output, shape index: {}]
  %s6 = sld [smem:[#allocation0]]
  $region61: #{tpu_custom_call.1} parent=0
    _
  %s8 = ssub.s32 1, %s6
  %s9 = scalar_select 0, %s8, %s6
  $region1: #{tpu_custom_call.1} parent=0
    #allocation2 [shape = 'u8[16384]{0}', space=vmem, size = 0x4000, scoped, tag = 'input window, operand 0']
    #allocation3 [shape = 's32[2]{0}', space=sflag, size = 0x8, scoped, tag = 'scoped memory for tpu_custom_call.1']
    #allocation4 [shape = 's32[2]{0}', space=sflag, size = 0x8, scoped, tag = 'scoped memory for tpu_custom_call.1']
    #allocation5 [shape = 'u8[2048]{0}', space=vmem, size = 0x800, scoped, tag = 'input window, operand 1, single buffered']
    #allocation6 [shape = 's32[1]{0}', space=sflag, size = 0x4, scoped, tag = 'scoped memory for tpu_custom_call.1']
    #allocation7 [shape = 'u8[16384]{0}', space=vmem, size = 0x4000, scoped, tag = 'output window, operand 0']
    %10 = vsyncpa [#allocation3], 0
    %s11 = scalar_lea.sflag [#allocation3], 1
    %12 = vsyncpa %s11, 0
    %13 = vsyncpa [#allocation6], 0
    %14 = vsyncpa [#allocation4], 0
    %s15 = scalar_lea.sflag [#allocation4], 1
    %16 = vsyncpa %s15, 0
    loop: start=0, step=1, limit=4
    $region2: #{tpu_custom_call.1} parent=1 // loop_pre_header
      _
    $region3: #{tpu_custom_call.1} parent=1 // loop_header
      %s18 = sphi 0, %s22
      %p19 = scmp.ge.s32.totalorder %s18, 4
      %s28 = sphi 0, %s30
      %s31 = sphi 0, %s28
      %s32 = sphi 0, %s31
      %s48 = sphi 0, %s32
      %s52 = sphi 0, %s52
      %s54 = sphi 0, %s52
      %s55 = sphi 0, %s54
      %s69 = sphi 0, %s55
      %s73 = sphi 0, %s73
      %s75 = sphi 0, %s73
      %s76 = sphi 0, %s75
      %s90 = sphi 0, %s76
      %s94 = sphi 0, %s94
      %s96 = sphi 0, %s94
      %s97 = sphi 0, %s96
      %s111 = sphi 0, %s97
      %s115 = sphi 0, %s115
      %s117 = sphi 0, %s115
      %s118 = sphi 0, %s117
      %s132 = sphi 0, %s118
      %s138 = sphi 0, %s140
      %s141 = sphi 0, %s138
      %s142 = sphi 0, %s141
      %s158 = sphi 0, %s142
    $region4: #{tpu_custom_call.1} parent=1 // loop_header_branch
      %21 = sbr.rel (%p19) target = $region8
    $region5: #{tpu_custom_call.1} parent=1 // loop_body
      %s23 = ssub.s32 %s18, 1
      %s24 = ssub.s32 %s18, 2
      %s25 = sadd.s32 %s18, 1
      %s26 = ssub.s32 %s18, %s25
      %p27 = scmp.eq.s32.totalorder %s26, 0
      %s29 = sadd.s32 %s28, 1
      %s30 = scalar_select %p27, %s28, %s29
      %p33 = pneg %p27
      %p34 = scmp.eq.s32.totalorder %s18, 1
      %p35 = por %p33, %p34
      %p36 = scmp.ne.s32.totalorder %s28, %s31
      %p37 = scmp.eq.s32.totalorder %s18, 0
      %p38 = por %p36, %p37
      %p39 = scmp.ne.s32.totalorder %s28, %s31
      %p40 = scmp.eq.s32.totalorder %s23, 1
      %p41 = por %p39, %p40
      %p42 = scmp.ne.s32.totalorder %s31, %s32
      %p43 = scmp.eq.s32.totalorder %s23, 0
      %p44 = por %p42, %p43
      %p45 = scmp.ne.s32.totalorder %s31, %s32
      %p46 = scmp.eq.s32.totalorder %s24, 1
      %p47 = por %p45, %p46
      %p49 = scmp.ne.s32.totalorder %s32, %s48
      %p50 = scmp.eq.s32.totalorder %s24, 0
      %p51 = por %p49, %p50
      %s53 = sadd.s32 %s52, 1
      %p56 = scmp.eq.s32.totalorder %s18, 1
      %p57 = scmp.ne.s32.totalorder %s52, %s54
      %p58 = scmp.eq.s32.totalorder %s18, 0
      %p59 = por %p57, %p58
      %p60 = scmp.ne.s32.totalorder %s52, %s54
      %p61 = scmp.eq.s32.totalorder %s23, 1
      %p62 = por %p60, %p61
      %p63 = scmp.ne.s32.totalorder %s54, %s55
      %p64 = scmp.eq.s32.totalorder %s23, 0
      %p65 = por %p63, %p64
      %p66 = scmp.ne.s32.totalorder %s54, %s55
      %p67 = scmp.eq.s32.totalorder %s24, 1
      %p68 = por %p66, %p67
      %p70 = scmp.ne.s32.totalorder %s55, %s69
      %p71 = scmp.eq.s32.totalorder %s24, 0
      %p72 = por %p70, %p71
      %s74 = sadd.s32 %s73, 1
      %p77 = scmp.eq.s32.totalorder %s18, 1
      %p78 = scmp.ne.s32.totalorder %s73, %s75
      %p79 = scmp.eq.s32.totalorder %s18, 0
      %p80 = por %p78, %p79
      %p81 = scmp.ne.s32.totalorder %s73, %s75
      %p82 = scmp.eq.s32.totalorder %s23, 1
      %p83 = por %p81, %p82
      %p84 = scmp.ne.s32.totalorder %s75, %s76
      %p85 = scmp.eq.s32.totalorder %s23, 0
      %p86 = por %p84, %p85
      %p87 = scmp.ne.s32.totalorder %s75, %s76
      %p88 = scmp.eq.s32.totalorder %s24, 1
      %p89 = por %p87, %p88
      %p91 = scmp.ne.s32.totalorder %s76, %s90
      %p92 = scmp.eq.s32.totalorder %s24, 0
      %p93 = por %p91, %p92
      %s95 = sadd.s32 %s94, 1
      %p98 = scmp.eq.s32.totalorder %s18, 1
      %p99 = scmp.ne.s32.totalorder %s94, %s96
      %p100 = scmp.eq.s32.totalorder %s18, 0
      %p101 = por %p99, %p100
      %p102 = scmp.ne.s32.totalorder %s94, %s96
      %p103 = scmp.eq.s32.totalorder %s23, 1
      %p104 = por %p102, %p103
      %p105 = scmp.ne.s32.totalorder %s96, %s97
      %p106 = scmp.eq.s32.totalorder %s23, 0
      %p107 = por %p105, %p106
      %p108 = scmp.ne.s32.totalorder %s96, %s97
      %p109 = scmp.eq.s32.totalorder %s24, 1
      %p110 = por %p108, %p109
      %p112 = scmp.ne.s32.totalorder %s97, %s111
      %p113 = scmp.eq.s32.totalorder %s24, 0
      %p114 = por %p112, %p113
      %s116 = sadd.s32 %s115, 1
      %p119 = scmp.eq.s32.totalorder %s18, 1
      %p120 = scmp.ne.s32.totalorder %s115, %s117
      %p121 = scmp.eq.s32.totalorder %s18, 0
      %p122 = por %p120, %p121
      %p123 = scmp.ne.s32.totalorder %s115, %s117
      %p124 = scmp.eq.s32.totalorder %s23, 1
      %p125 = por %p123, %p124
      %p126 = scmp.ne.s32.totalorder %s117, %s118
      %p127 = scmp.eq.s32.totalorder %s23, 0
      %p128 = por %p126, %p127
      %p129 = scmp.ne.s32.totalorder %s117, %s118
      %p130 = scmp.eq.s32.totalorder %s24, 1
      %p131 = por %p129, %p130
      %p133 = scmp.ne.s32.totalorder %s118, %s132
      %p134 = scmp.eq.s32.totalorder %s24, 0
      %p135 = por %p133, %p134
      %s136 = ssub.s32 %s18, %s25
      %p137 = scmp.eq.s32.totalorder %s136, 0
      %s139 = sadd.s32 %s138, 1
      %s140 = scalar_select %p137, %s138, %s139
      %p143 = pneg %p137
      %p144 = scmp.eq.s32.totalorder %s18, 1
      %p145 = por %p143, %p144
      %p146 = scmp.ne.s32.totalorder %s138, %s141
      %p147 = scmp.eq.s32.totalorder %s18, 0
      %p148 = por %p146, %p147
      %p149 = scmp.ne.s32.totalorder %s138, %s141
      %p150 = scmp.eq.s32.totalorder %s23, 1
      %p151 = por %p149, %p150
      %p152 = scmp.ne.s32.totalorder %s141, %s142
      %p153 = scmp.eq.s32.totalorder %s23, 0
      %p154 = por %p152, %p153
      %p155 = scmp.ne.s32.totalorder %s141, %s142
      %p156 = scmp.eq.s32.totalorder %s24, 1
      %p157 = por %p155, %p156
      %p159 = scmp.ne.s32.totalorder %s142, %s158
      %p160 = scmp.eq.s32.totalorder %s24, 0
      %p161 = por %p159, %p160
      %p162 = scmp.le.s32.totalorder 1, %s18
      %p163 = scmp.lt.s32.totalorder %s18, 3
      %p164 = pnand %p162, %p163
      %p165 = pneg %p164
      // Predicated region
      $region9: #{tpu_custom_call.1} parent=5 // pred_check
        _
      $region10: #{tpu_custom_call.1} parent=5 // pred_check_branch
        %167 = sbr.rel (%p164) target = $region12
      $region11: #{tpu_custom_call.1} parent=5 // pred_region
        %s168 = ssub.s32 %s18, 1
        // Predicated region
        $region13: #{tpu_custom_call.1} parent=11 // pred_check
          %p169 = pneg %p65
        $region14: #{tpu_custom_call.1} parent=11 // pred_check_branch
          %171 = sbr.rel (%p169) target = $region16
        $region15: #{tpu_custom_call.1} parent=11 // pred_region
          %173 = vsyncadd [#allocation6], 0
          %s175 = sshll.u32 %s1, 4
          %s176 = int_to_ptr.hbm [resolvable:$true] %s175
          %s177 = sshll.u32 [#allocation5], 4
          %s178 = int_to_ptr.vmem [resolvable:$true] %s177
          %180 = dma.hbm_to_vmem [thread:$0]  %s176, 64, %s178, [#allocation6]
        $region16: #{tpu_custom_call.1} parent=11 // pred_fallthru
          _
        // Predicated region
        $region17: #{tpu_custom_call.1} parent=11 // pred_check
          %p181 = pneg %p86
        $region18: #{tpu_custom_call.1} parent=11 // pred_check_branch
          %183 = sbr.rel (%p181) target = $region20
        $region19: #{tpu_custom_call.1} parent=11 // pred_region
          _
        $region20: #{tpu_custom_call.1} parent=11 // pred_fallthru
          _
        // Predicated region
        $region21: #{tpu_custom_call.1} parent=11 // pred_check
          %p184 = pneg %p107
        $region22: #{tpu_custom_call.1} parent=11 // pred_check_branch
          %186 = sbr.rel (%p184) target = $region24
        $region23: #{tpu_custom_call.1} parent=11 // pred_region
          _
        $region24: #{tpu_custom_call.1} parent=11 // pred_fallthru
          _
        // Predicated region
        $region25: #{tpu_custom_call.1} parent=11 // pred_check
          %p187 = pneg %p128
        $region26: #{tpu_custom_call.1} parent=11 // pred_check_branch
          %189 = sbr.rel (%p187) target = $region28
        $region27: #{tpu_custom_call.1} parent=11 // pred_region
          _
        $region28: #{tpu_custom_call.1} parent=11 // pred_fallthru
          _
      $region12: #{tpu_custom_call.1} parent=5 // pred_fallthru
        _
      %p190 = scmp.lt.s32.totalorder %s18, 2
      // Predicated region
      $region29: #{tpu_custom_call.1} parent=5 // pred_check
        %p191 = pneg %p190
      $region30: #{tpu_custom_call.1} parent=5 // pred_check_branch
        %193 = sbr.rel (%p191) target = $region32
      $region31: #{tpu_custom_call.1} parent=5 // pred_region
        // Predicated region
        $region33: #{tpu_custom_call.1} parent=31 // pred_check
          %p194 = pneg %p38
        $region34: #{tpu_custom_call.1} parent=31 // pred_check_branch
          %196 = sbr.rel (%p194) target = $region36
        $region35: #{tpu_custom_call.1} parent=31 // pred_region
          %s197 = sand.u32 %s28, 1
          %s198 = scalar_lea.sflag [#allocation3], %s197
          %s199 = sand.u32 %s28, 1
          %s200 = smul.addr %s199, 16
          %s201 = scalar_lea.vmem [#allocation2], %s200
          %s202 = smul.u32 2, %s18
          %204 = vsyncadd %s198, 0
          %s205 = smul.addr %s202, 8
          %s206 = scalar_lea.hbm %s0, %s205
          %s207 = sshll.u32 %s206, 4
          %s208 = int_to_ptr.hbm [resolvable:$true] %s207
          %s209 = sshll.u32 %s201, 4
          %s210 = int_to_ptr.vmem [resolvable:$true] %s209
          %215 = dma.hbm_to_vmem [thread:$0]  %s208, 256, %s210, %s198, 128, 128, 8
        $region36: #{tpu_custom_call.1} parent=31 // pred_fallthru
          _
      $region32: #{tpu_custom_call.1} parent=5 // pred_fallthru
        _
      %p216 = scmp.le.s32.totalorder 1, %s18
      %p217 = scmp.lt.s32.totalorder %s18, 3
      %p218 = pnand %p216, %p217
      %p219 = pneg %p218
      // Predicated region
      $region37: #{tpu_custom_call.1} parent=5 // pred_check
        _
      $region38: #{tpu_custom_call.1} parent=5 // pred_check_branch
        %221 = sbr.rel (%p218) target = $region40
      $region39: #{tpu_custom_call.1} parent=5 // pred_region
        %s222 = ssub.s32 %s18, 1
        %s223 = sand.u32 %s31, 1
        %s224 = scalar_lea.sflag [#allocation3], %s223
        %s225 = sand.u32 %s31, 1
        %s226 = smul.addr %s225, 16
        %s227 = scalar_lea.vmem [#allocation2], %s226
        // Predicated region
        $region41: #{tpu_custom_call.1} parent=39 // pred_check
          %p228 = pneg %p44
        $region42: #{tpu_custom_call.1} parent=39 // pred_check_branch
          %230 = sbr.rel (%p228) target = $region44
        $region43: #{tpu_custom_call.1} parent=39 // pred_region
          %232 = dma.done %s224, 256
        $region44: #{tpu_custom_call.1} parent=39 // pred_fallthru
          _
        // Predicated region
        $region45: #{tpu_custom_call.1} parent=39 // pred_check
          %p233 = pneg %p65
        $region46: #{tpu_custom_call.1} parent=39 // pred_check_branch
          %235 = sbr.rel (%p233) target = $region48
        $region47: #{tpu_custom_call.1} parent=39 // pred_region
          %237 = dma.done [#allocation6], 64
        $region48: #{tpu_custom_call.1} parent=39 // pred_fallthru
          _
        %s238 = sand.u32 %s31, 1
        %s239 = scalar_lea.sflag [#allocation3], %s238
        %s240 = sand.u32 %s31, 1
        %s241 = smul.addr %s240, 16
        %s242 = scalar_lea.vmem [#allocation2], %s241
        %p243 = pneg %p44
        %p244 = pneg %p41
        %p245 = pneg %p65
        %p246 = pneg %p62
        %p247 = pneg %p86
        %p248 = pneg %p83
        %p249 = pneg %p107
        %p250 = pneg %p104
        %p251 = pneg %p128
        %p252 = pneg %p125
        %p253 = pneg %p154
        %p254 = pneg %p151
        %s255 = sand.u32 %s141, 1
        %s256 = scalar_lea.sflag [#allocation4], %s255
        %s257 = sand.u32 %s141, 1
        %s258 = smul.addr %s257, 16
        %s259 = scalar_lea.vmem [#allocation7], %s258
        %s260 = smul.u32 2, %s23
        %s261 = smul.u32 2, %s23
        %v262 = vld [vmem:[%s227] sm:$0xff]
        %v263 = vld [vmem:[%s227 + $0x8] sm:$0xff]
        %v264 = vld [vmem:[#allocation5] sm:$0x1]
        %v265 = vld [vmem:[#allocation5 + $0x1] sm:$0x1]
        %v266 = vld [vmem:[#allocation5 + $0x2] sm:$0x1]
        %v267 = vlaneseq
        %v268 = vshrl.u32 %v267, 7
        %v269 = vadd.s32 %v268, 8
        %vm270 = vcmp.lt.s32.totalorder %v268, 0
        %v271 = vsub.s32 0, %v268
        %v272 = vsel %vm270, %v271, %v268
        %v273 = vshrl.u32 %v272, 4
        %v274 = vand.u32 %v272, 15
        %v275 = vsub.s32 0, %v274
        %v276 = vsel %vm270, %v275, %v274
        %vm277 = vcmp.lt.s32.totalorder %v269, 0
        %v278 = vsub.s32 0, %v269
        %v279 = vsel %vm277, %v278, %v269
        %v280 = vshrl.u32 %v279, 4
        %v281 = vand.u32 %v279, 15
        %v282 = vsub.s32 0, %v281
        %v283 = vsel %vm277, %v282, %v281
        %vm284 = vcmp.ne.s32.totalorder %v276, 0
        %vm285 = vcmp.ne.s32.totalorder %v283, 0
        %vm286 = vcmp.lt.s32.totalorder %v276, 0
        %vm287 = vcmp.lt.s32.totalorder %v283, 0
        %vm288 = vmand %vm286, %vm284
        %vm289 = vmand %vm287, %vm285
        %v290 = vadd.s32 %v276, 16
        %v291 = vadd.s32 %v283, 16
        %v292 = vsel %vm288, %v290, %v276
        %v293 = vsel %vm289, %v291, %v283
        %vm294 = vcmp.eq.s32.totalorder %v292, 0
        %vm295 = vcmp.eq.s32.totalorder %v293, 0
        %v296 = vrot.slane %v262, 7
        %v297 = vrot.slane %v263, 7
        %vm298 = vcmp.lt.s32.totalorder %v268, 1
        %v299 = vsel %vm298, %v296, %v297
        %v300 = vsel %vm298, %v297, %v296
        %v301 = vsel %vm294, 0.0, %v300
        %v302 = vsel %vm295, 0.0, %v299
        %vm303 = vcmp.eq.s32.totalorder %v292, 15
        %vm304 = vcmp.eq.s32.totalorder %v293, 15
        %v305 = vrot.slane %v262, 1
        %v306 = vrot.slane %v263, 1
        %vm307 = vcmp.lt.s32.totalorder %v268, 7
        %v308 = vsel %vm307, %v305, %v306
        %v309 = vsel %vm307, %v306, %v305
        %v310 = vsel %vm303, 0.0, %v308
        %v311 = vsel %vm304, 0.0, %v309
        %v312 = vperm.slane %v264, 0
        %v313 = vmul.f32 %v301, %v312
        %v314 = vmul.f32 %v302, %v312
        %v315 = vperm.slane %v265, 0
        %v316 = vmul.f32 %v262, %v315
        %v317 = vmul.f32 %v263, %v315
        %v318 = vadd.f32 %v313, %v316
        %v319 = vadd.f32 %v314, %v317
        %v320 = vperm.slane %v266, 0
        %v321 = vmul.f32 %v310, %v320
        %v322 = vmul.f32 %v311, %v320
        %v323 = vadd.f32 %v318, %v321
        %v324 = vadd.f32 %v319, %v322
        %v325 = vld [vmem:[%s2] sm:$0x1]
        %v327 = vperm.slane %v325, 0
        %v329 = vadd.f32 %v323, %v327
        %v330 = vadd.f32 %v324, %v327
        %331 = vadd.xlane.f32.xlu0 %v329
        %v332 = vpop.xlane.xlu0 %331
        %333 = vadd.xlane.f32.xlu0 %v330
        %v334 = vpop.xlane.xlu0 %333
        %v335 = vrcp.pop 128.0
        %v336 = vmul.f32 128.0, %v335
        %v337 = vsub.f32 1.0, %v336
        %v338 = vmul.f32 %v335, %v337
        %v339 = vadd.f32 %v335, %v338
        %vm340 = vweird.f32 %v335
        %v341 = vsel %vm340, %v335, %v339
        %v342 = vmul.f32 %v332, %v341
        %v343 = vmul.f32 %v334, %v341
        %v344 = vsub.f32 %v329, %v342
        %v345 = vsub.f32 %v330, %v343
        %v346 = vmul.f32 %v344, %v344
        %v347 = vmul.f32 %v345, %v345
        %348 = vadd.xlane.f32.xlu0 %v346
        %v349 = vpop.xlane.xlu0 %348
        %350 = vadd.xlane.f32.xlu0 %v347
        %v351 = vpop.xlane.xlu0 %350
        %v352 = vmul.f32 %v349, %v341
        %v353 = vmul.f32 %v351, %v341
        %v354 = vadd.f32 %v352, 1e-05
        %v355 = vadd.f32 %v353, 1e-05
        %v356 = vrsqrt.pop %v354
        %v357 = vmul.f32 %v356, %v354
        %v358 = vmul.f32 %v357, %v356
        %v359 = vmul.f32 0.5, %v358
        %v360 = vsub.f32 1.5, %v359
        %v361 = vmul.f32 %v356, %v360
        %vm362 = vweird.f32 %v354
        %vm363 = vweird.f32 %v356
        %vm364 = vmor %vm362, %vm363
        %v365 = vsel %vm364, %v356, %v361
        %v366 = vrsqrt.pop %v355
        %v367 = vmul.f32 %v366, %v355
        %v368 = vmul.f32 %v367, %v366
        %v369 = vmul.f32 0.5, %v368
        %v370 = vsub.f32 1.5, %v369
        %v371 = vmul.f32 %v366, %v370
        %vm372 = vweird.f32 %v355
        %vm373 = vweird.f32 %v366
        %vm374 = vmor %vm372, %vm373
        %v375 = vsel %vm374, %v366, %v371
        %v376 = vmul.f32 %v344, %v365
        %v377 = vmul.f32 %v345, %v375
        %v378 = vld [vmem:[%s3] sm:$0x1]
        %v380 = vperm.slane %v378, 0
        %v382 = vmul.f32 %v376, %v380
        %v383 = vmul.f32 %v377, %v380
        %v384 = vld [vmem:[%s4] sm:$0x1]
        %v386 = vperm.slane %v384, 0
        %v388 = vadd.f32 %v382, %v386
        %v389 = vadd.f32 %v383, %v386
        %v390 = vmul.f32 %v388, 0.5
        %v391 = vmul.f32 %v389, 0.5
        %v392 = vmul.f32 %v388, 0.70710677
        %v393 = vmul.f32 %v389, 0.70710677
        %v394 = vmul.f32 %v392, %v392
        %v395 = vmin.f32 16.0, %v394
        %v396 = vmul.f32 %v395, 2.1237322e-06
        %v397 = vadd.f32 %v396, 0.00028619796
        %v398 = vmul.f32 %v395, %v397
        %v399 = vadd.f32 %v398, 0.0036580483
        %v400 = vmul.f32 %v395, %v399
        %v401 = vadd.f32 %v400, 0.05243302
        %v402 = vmul.f32 %v395, %v401
        %v403 = vadd.f32 %v402, 0.18741608
        %v404 = vmul.f32 %v395, %v403
        %v405 = vadd.f32 %v404, 1.1283791
        %v406 = vmul.f32 %v392, %v405
        %v407 = vmul.f32 %v395, 3.8918573e-05
        %v408 = vadd.f32 %v407, 0.001143296
        %v409 = vmul.f32 %v395, %v408
        %v410 = vadd.f32 %v409, 0.014752088
        %v411 = vmul.f32 %v395, %v410
        %v412 = vadd.f32 %v411, 0.112945676
        %v413 = vmul.f32 %v395, %v412
        %v414 = vadd.f32 %v413, 0.4994258
        %v415 = vmul.f32 %v395, %v414
        %v416 = vadd.f32 %v415, 1.0
        %v417 = vrcp.pop %v416
        %v418 = vmul.f32 %v416, %v417
        %v419 = vsub.f32 1.0, %v418
        %v420 = vmul.f32 %v417, %v419
        %v421 = vadd.f32 %v417, %v420
        %vm422 = vweird.f32 %v416
        %vm423 = vweird.f32 %v417
        %vm424 = vmor %vm422, %vm423
        %v425 = vsel %vm424, %v417, %v421
        %v426 = vand.u32 2147483647, %v416
        %vm427 = vcmp.eq.f32.partialorder %v426, 8.507059e+37
        %v428 = vand.u32 %v416, 2147483648
        %v429 = vor.u32 1.1754944e-38, %v428
        %v430 = vsel %vm427, %v429, %v425
        %v431 = vmul.f32 %v406, %v430
        %v432 = vmin.f32 %v431, 1.0
        %v433 = vmax.f32 %v432, -1.0
        %v434 = vmul.f32 %v393, %v393
        %v435 = vmin.f32 16.0, %v434
        %v436 = vmul.f32 %v435, 2.1237322e-06
        %v437 = vadd.f32 %v436, 0.00028619796
        %v438 = vmul.f32 %v435, %v437
        %v439 = vadd.f32 %v438, 0.0036580483
        %v440 = vmul.f32 %v435, %v439
        %v441 = vadd.f32 %v440, 0.05243302
        %v442 = vmul.f32 %v435, %v441
        %v443 = vadd.f32 %v442, 0.18741608
        %v444 = vmul.f32 %v435, %v443
        %v445 = vadd.f32 %v444, 1.1283791
        %v446 = vmul.f32 %v393, %v445
        %v447 = vmul.f32 %v435, 3.8918573e-05
        %v448 = vadd.f32 %v447, 0.001143296
        %v449 = vmul.f32 %v435, %v448
        %v450 = vadd.f32 %v449, 0.014752088
        %v451 = vmul.f32 %v435, %v450
        %v452 = vadd.f32 %v451, 0.112945676
        %v453 = vmul.f32 %v435, %v452
        %v454 = vadd.f32 %v453, 0.4994258
        %v455 = vmul.f32 %v435, %v454
        %v456 = vadd.f32 %v455, 1.0
        %v457 = vrcp.pop %v456
        %v458 = vmul.f32 %v456, %v457
        %v459 = vsub.f32 1.0, %v458
        %v460 = vmul.f32 %v457, %v459
        %v461 = vadd.f32 %v457, %v460
        %vm462 = vweird.f32 %v456
        %vm463 = vweird.f32 %v457
        %vm464 = vmor %vm462, %vm463
        %v465 = vsel %vm464, %v457, %v461
        %v466 = vand.u32 2147483647, %v456
        %vm467 = vcmp.eq.f32.partialorder %v466, 8.507059e+37
        %v468 = vand.u32 %v456, 2147483648
        %v469 = vor.u32 1.1754944e-38, %v468
        %v470 = vsel %vm467, %v469, %v465
        %v471 = vmul.f32 %v446, %v470
        %v472 = vmin.f32 %v471, 1.0
        %v473 = vmax.f32 %v472, -1.0
        %v474 = vadd.f32 %v433, 1.0
        %v475 = vadd.f32 %v473, 1.0
        %v476 = vmul.f32 %v390, %v474
        %v477 = vmul.f32 %v391, %v475
        %v478 = vadd.f32 %v262, %v476
        %v479 = vadd.f32 %v263, %v477
        %480 = vst [vmem:[%s259] sm:$0xff] %v478
        %481 = vst [vmem:[%s259 + $0x8] sm:$0xff] %v479
        %s482 = sand.u32 %s141, 1
        %s483 = scalar_lea.sflag [#allocation4], %s482
        %s484 = sand.u32 %s141, 1
        %s485 = smul.addr %s484, 16
        %s486 = scalar_lea.vmem [#allocation7], %s485
        // Predicated region
        $region49: #{tpu_custom_call.1} parent=39 // pred_check
          %p487 = pneg %p151
        $region50: #{tpu_custom_call.1} parent=39 // pred_check_branch
          %489 = sbr.rel (%p487) target = $region52
        $region51: #{tpu_custom_call.1} parent=39 // pred_region
          %s490 = smul.u32 2, %s23
          %492 = vsyncadd %s483, 0
          %s493 = smul.addr %s490, 8
          %s494 = scalar_lea.hbm %s5, %s493
          %s495 = sshll.u32 %s486, 4
          %s496 = int_to_ptr.vmem [resolvable:$true] %s495
          %s497 = sshll.u32 %s494, 4
          %s498 = int_to_ptr.hbm [resolvable:$true] %s497
          %503 = dma.vmem_to_hbm [thread:$0]  %s496, 256, %s498, %s483, 128, 128, 8
        $region52: #{tpu_custom_call.1} parent=39 // pred_fallthru
          _
      $region40: #{tpu_custom_call.1} parent=5 // pred_fallthru
        _
      %p504 = scmp.le.s32.totalorder 2, %s18
      // Predicated region
      $region53: #{tpu_custom_call.1} parent=5 // pred_check
        %p505 = pneg %p504
      $region54: #{tpu_custom_call.1} parent=5 // pred_check_branch
        %507 = sbr.rel (%p505) target = $region56
      $region55: #{tpu_custom_call.1} parent=5 // pred_region
        %s508 = ssub.s32 %s18, 2
        // Predicated region
        $region57: #{tpu_custom_call.1} parent=55 // pred_check
          %p509 = pneg %p157
        $region58: #{tpu_custom_call.1} parent=55 // pred_check_branch
          %511 = sbr.rel (%p509) target = $region60
        $region59: #{tpu_custom_call.1} parent=55 // pred_region
          %s512 = sand.u32 %s142, 1
          %s513 = scalar_lea.sflag [#allocation4], %s512
          %s514 = sand.u32 %s142, 1
          %s515 = smul.addr %s514, 16
          %s516 = scalar_lea.vmem [#allocation7], %s515
          %518 = dma.done %s513, 256
        $region60: #{tpu_custom_call.1} parent=55 // pred_fallthru
          _
      $region56: #{tpu_custom_call.1} parent=5 // pred_fallthru
        _
    $region6: #{tpu_custom_call.1} parent=1 // loop_footer
      %s22 = sadd.s32 1, %s18
    $region7: #{tpu_custom_call.1} parent=1 // loop_footer_branch
      %17 = sbr.rel target = $region3
    $region8: #{tpu_custom_call.1} parent=1 // loop_exit
      _
    %519 = vsyncpa [#allocation3], 1
    %s520 = scalar_lea.sflag [#allocation3], 1
    %521 = vsyncpa %s520, 1
    %522 = vsyncpa [#allocation6], 1
    %523 = vsyncpa [#allocation4], 1
    %s524 = scalar_lea.sflag [#allocation4], 1
    %525 = vsyncpa %s524, 1

</llo_original>
